<compile_context>
chip_gen: v7x
topology: tpu7x:2x2x1
jax: 0.10.0
libtpu: 0.0.40
codegen_flags: <defaults>
</compile_context>

<pallas_src>
import math

import jax
import jax.numpy as jnp
from jax.experimental import pallas as pl
from jax.experimental.pallas import tpu as pltpu


def _cdiv(a, b):
    return -(-a // b)


def _round_up(x, m):
    return _cdiv(x, m) * m


# ---------------------------------------------------------------------------
# Kernels
# ---------------------------------------------------------------------------
def _ffn_partial(x_ref, w1_ref, b1_ref, w2_ref):
    """relu(x @ W1[:, kblk] + b1[kblk]) @ W2[kblk, :] for the current hidden block."""
    h = jnp.dot(x_ref[...], w1_ref[...], preferred_element_type=jnp.float32)
    h = jnp.maximum(h + b1_ref[...], 0.0)
    # Hidden activation is cast to the weight dtype for the second MXU pass
    # (intentional extra rounding when weights are bf16; biases/acc stay f32).
    return jnp.dot(h.astype(w2_ref.dtype), w2_ref[...],
                   preferred_element_type=jnp.float32)


def ffn_kernel_f32out(x_ref, w1_ref, b1_ref, w2_ref, b2_ref, o_ref):
    """f32 output: accumulate directly into the VMEM-resident output block."""
    k = pl.program_id(1)

    @pl.when(k == 0)
    def _init():
        # Fold the second bias into the accumulator init (hoisted broadcast).
        o_ref[...] = jnp.broadcast_to(b2_ref[...], o_ref.shape)

    o_ref[...] += _ffn_partial(x_ref, w1_ref, b1_ref, w2_ref)


def ffn_kernel_acc(x_ref, w1_ref, b1_ref, w2_ref, b2_ref, o_ref, acc_ref):
    """Sub-32-bit output: accumulate in an f32 scratch, cast once at the end."""
    k = pl.program_id(1)

    @pl.when(k == 0)
    def _init():
        acc_ref[...] = jnp.broadcast_to(b2_ref[...], acc_ref.shape)

    acc_ref[...] += _ffn_partial(x_ref, w1_ref, b1_ref, w2_ref)

    @pl.when(k == pl.num_programs(1) - 1)
    def _finalize():
        o_ref[...] = acc_ref[...].astype(o_ref.dtype)


# ---------------------------------------------------------------------------
# Tile / VMEM configuration
# ---------------------------------------------------------------------------
def _ffn_config(M, inp_dim, hidden, w_isz, x_isz, out_isz, need_acc,
                tm_override=None, th_override=None):
    """Derive (row tile, hidden tile, padded hidden, vmem limit) from the VMEM budget."""
    try:
        vmem_cap = int(pltpu.get_tpu_info().vmem_capacity_bytes)
        info_ok = True
    except Exception:
        vmem_cap, info_ok = 64 << 20, False          # conservative: v7x-sized VMEM
    budget = (vmem_cap * 3) // 4                     # headroom for Mosaic scratch
    dual_core = info_ok and vmem_cap <= (64 << 20)   # v7x heuristic: 2 TCs / 64 MiB

    min_isz = min(x_isz, out_isz)
    row_align = {4: 8, 2: 16, 1: 32}.get(min_isz, 8)
    M_aligned = _round_up(max(M, 1), row_align)

    # VMEM bytes per output row: double-buffered x & out tiles (+ f32 scratch).
    row_bytes = inp_dim * (2 * x_isz + 2 * out_isz + (4 if need_acc else 0))

    def wtile_bytes(th_):            # double-buffered W1 + W2 tiles
        return 4 * inp_dim * th_ * w_isz

    def bias_bytes(h_):              # double-buffered f32 b1 + b2 tiles
        return 2 * (h_ + inp_dim) * 4

    def tm_for(th_, h_):
        avail = budget - wtile_bytes(th_) - bias_bytes(h_)
        t = max(avail // row_bytes, row_align)
        t = min(t, 1024, M_aligned)
        if t >= 128:
            t = (t // 128) * 128
        else:
            t = max(row_align, (t // row_align) * row_align)
        return int(t)

    # ---- hidden (reduction) tile ----
    if th_override is not None:
        if th_override >= hidden:
            th, hidden_p = hidden, hidden
        else:
            th = max(128, (int(th_override) // 128) * 128)
            hidden_p = _round_up(hidden, th)
    elif (wtile_bytes(hidden) + bias_bytes(hidden)
          + min(M_aligned, 128) * row_bytes) <= budget:
        # Weight-resident fast path: weights DMA'd exactly once for the call.
        th, hidden_p = hidden, hidden
    else:
        # Streaming path: always keep a real reduction tile; pad hidden once.
        hidden_p = _round_up(hidden, 256)
        best = None
        for cand in (512, 256, 128):
            if hidden_p % cand:
                continue
            key_ = (tm_for(cand, hidden_p), cand)    # maximize tm, then th
            if best is None or key_ > best[0]:
                best = (key_, cand)
        th = best[1]

    # ---- row tile ----
    if tm_override is not None:
        tm = max(row_align, (int(tm_override) // row_align) * row_align)
        tm = min(tm, M_aligned)
    else:
        tm = tm_for(th, hidden_p)
        # v7x: 2 TensorCores share the "parallel" axis -> need >= 2 row blocks.
        if dual_core and _cdiv(M, tm) < 2:
            half = _round_up(_cdiv(M, 2), row_align)
            if half < tm:
                tm = max(row_align, half)

    resident = wtile_bytes(th) + bias_bytes(hidden_p) + tm * row_bytes
    vmem_limit = int(min(vmem_cap - (2 << 20), max(32 << 20, resident + (16 << 20))))
    vmem_limit = max(vmem_limit, resident + (1 << 20))
    return tm, th, hidden_p, vmem_limit


# ---------------------------------------------------------------------------
# Wrapper
# ---------------------------------------------------------------------------
def feed_forward_block(x, w1, b1, w2, b2, *, tm=None, th=None):
    """x: [batch, seq, inp_dim] -> [batch, seq, inp_dim].

    w1: [inp_dim, hidden], w2: [hidden, inp_dim] (pre-transposed vs torch).
    Compute dtype follows the weight dtype; output dtype follows x.
    """
    batch, seq, inp_dim = x.shape
    hidden = w1.shape[1]
    M = batch * seq

    compute_dtype = w1.dtype
    out_dtype = x.dtype
    need_acc = jnp.dtype(out_dtype) != jnp.dtype(jnp.float32)

    c_isz = jnp.dtype(compute_dtype).itemsize
    o_isz = jnp.dtype(out_dtype).itemsize

    tm_, th_, hidden_p, vmem_limit = _ffn_config(
        M, inp_dim, hidden, c_isz, c_isz, o_isz, need_acc,
        tm_override=tm, th_override=th)

    x2d = x.reshape(M, inp_dim).astype(compute_dtype)
    b1f = b1.astype(jnp.float32).reshape(1, hidden)
    b2f = b2.astype(jnp.float32).reshape(1, inp_dim)
    w1p, w2p = w1, w2
    if hidden_p != hidden:
        # Zero-pad the hidden dim so it tiles cleanly: relu(x@0 + 0) = 0 and the
        # padded W2 rows are zero, so the padded units contribute exactly 0.
        pad = hidden_p - hidden
        w1p = jnp.pad(w1, ((0, 0), (0, pad)))
        w2p = jnp.pad(w2, ((0, pad), (0, 0)))
        b1f = jnp.pad(b1f, ((0, 0), (0, pad)))

    n_rows = _cdiv(M, tm_)
    n_k = hidden_p // th_
    grid = (n_rows, n_k)

    # Advisory cost estimate; weights are re-streamed once per row block unless
    # the hidden axis has a single block (weight-resident path).
    w_streams = 1 if n_k == 1 else n_rows
    flops = 4 * M * inp_dim * hidden_p
    bytes_accessed = int(
        x2d.size * c_isz + M * inp_dim * o_isz
        + w_streams * ((w1p.size + w2p.size) * c_isz + (b1f.size + b2f.size) * 4))
    cost = pl.CostEstimate(flops=int(flops), transcendentals=0,
                           bytes_accessed=bytes_accessed)

    in_specs = [
        pl.BlockSpec((tm_, inp_dim), lambda i, k: (i, 0)),   # x row tile
        pl.BlockSpec((inp_dim, th_), lambda i, k: (0, k)),   # W1 hidden block
        pl.BlockSpec((1, th_),       lambda i, k: (0, k)),   # b1 hidden block
        pl.BlockSpec((th_, inp_dim), lambda i, k: (k, 0)),   # W2 hidden block
        pl.BlockSpec((1, inp_dim),   lambda i, k: (0, 0)),   # b2 (grid-invariant)
    ]
    out_spec = pl.BlockSpec((tm_, inp_dim), lambda i, k: (i, 0))

    if need_acc:
        kernel = ffn_kernel_acc
        scratch = [pltpu.VMEM((tm_, inp_dim), jnp.float32)]
    else:
        kernel = ffn_kernel_f32out
        scratch = []

    out2d = pl.pallas_call(
        kernel,
        out_shape=jax.ShapeDtypeStruct((M, inp_dim), out_dtype),
        grid_spec=pltpu.PrefetchScalarGridSpec(
            num_scalar_prefetch=0,
            grid=grid,
            in_specs=in_specs,
            out_specs=out_spec,
            scratch_shapes=scratch),
        compiler_params=pltpu.CompilerParams(
            dimension_semantics=("parallel", "arbitrary"),
            vmem_limit_bytes=int(vmem_limit)),
        cost_estimate=cost,
    )(x2d, w1p, b1f, w2p, b2f)

    return out2d.reshape(batch, seq, inp_dim)


# ---------------------------------------------------------------------------
# Init matching the PyTorch module's __init__ semantics
# ---------------------------------------------------------------------------
def init_params(key, inp_dim, hidden_dim):
    c1 = math.sqrt(6.0 / (inp_dim + hidden_dim))   # uniform_, linear1.weight
    c2 = math.sqrt(6.0 / (hidden_dim + inp_dim))   # uniform_, linear2.weight
    kb1 = 1.0 / math.sqrt(inp_dim)                 # nn.Linear default bias bound
    kb2 = 1.0 / math.sqrt(hidden_dim)

    k1, k2, k3, k4 = jax.random.split(key, 4)
    # Stored transposed relative to torch (out,in): here [in, out] for x @ W.
    w1 = jax.random.uniform(k1, (inp_dim, hidden_dim), jnp.float32, -c1, c1)
    b1 = jax.random.uniform(k2, (hidden_dim,), jnp.float32, -kb1, kb1)
    w2 = jax.random.uniform(k3, (hidden_dim, inp_dim), jnp.float32, -c2, c2)
    b2 = jax.random.uniform(k4, (inp_dim,), jnp.float32, -kb2, kb2)
    return w1, b1, w2, b2


if __name__ == "__main__":
    # ---- 1) small f32 case: weight-resident path, direct f32 accumulation ----
    batch, seq, inp_dim, hidden_dim = 2, 8, 32, 64
    key = jax.random.PRNGKey(0)
    kx, kp = jax.random.split(key)
    x = jax.random.normal(kx, (batch, seq, inp_dim), jnp.float32)
    w1, b1, w2, b2 = init_params(kp, inp_dim, hidden_dim)

    ref = jnp.maximum(x @ w1 + b1, 0.0) @ w2 + b2

    y = jax.block_until_ready(feed_forward_block(x, w1, b1, w2, b2))
    assert y.shape == (batch, seq, inp_dim)
    assert jnp.allclose(y, ref, atol=1e-5, rtol=1e-5)

    # ---- 2) bf16 inputs + bf16 weights: f32 scratch-accumulator path ----
    y_bf16 = jax.block_until_ready(
        feed_forward_block(x.astype(jnp.bfloat16),
                           w1.astype(jnp.bfloat16), b1,
                           w2.astype(jnp.bfloat16), b2))
    assert y_bf16.shape == (batch, seq, inp_dim)
    assert y_bf16.dtype == jnp.bfloat16
    assert jnp.allclose(y_bf16.astype(jnp.float32), ref, atol=1e-1, rtol=1e-1)

    # ---- 3) streaming path: multi-step hidden reduction + ragged row block ----
    b2_, s2_, d2_, h2_ = 2, 60, 128, 384          # M=120 -> ragged last block
    kx2, kp2 = jax.random.split(jax.random.PRNGKey(1))
    x2 = jax.random.normal(kx2, (b2_, s2_, d2_), jnp.float32)
    p1, q1, p2, q2 = init_params(kp2, d2_, h2_)
    ref2 = jnp.maximum(x2 @ p1 + q1, 0.0) @ p2 + q2

    y2 = jax.block_until_ready(
        feed_forward_block(x2, p1, q1, p2, q2, tm=64, th=128))
    assert y2.shape == (b2_, s2_, d2_)
    assert jnp.allclose(y2, ref2, atol=1e-3, rtol=1e-3)

    print("KERNEL_OK")
</pallas_src>

<mosaic_0001>
module attributes {stable_mosaic.version = 11 : i64} {
  func.func @ffn_kernel_f32out(%arg0: i32, %arg1: i32, %arg2: memref<16x32xf32, #tpu.memory_space<vmem>>, %arg3: memref<32x64xf32, #tpu.memory_space<vmem>>, %arg4: memref<1x64xf32, #tpu.memory_space<vmem>>, %arg5: memref<64x32xf32, #tpu.memory_space<vmem>>, %arg6: memref<1x32xf32, #tpu.memory_space<vmem>>, %arg7: memref<16x32xf32, #tpu.memory_space<vmem>>) attributes {dimension_semantics = [#tpu.dimension_semantics<parallel>, #tpu.dimension_semantics<arbitrary>], iteration_bounds = array<i64: 1, 1>, scalar_prefetch = 0 : i64, scratch_operands = 0 : i64, tpu.core_type = #tpu.core_type<tc>, window_params = [{transform_indices = @transform_0, window_bounds = array<i64: 16, 32>}, {transform_indices = @transform_1, window_bounds = array<i64: 32, 64>}, {transform_indices = @transform_2, window_bounds = array<i64: 1, 64>}, {transform_indices = @transform_3, window_bounds = array<i64: 64, 32>}, {pipeline_mode = #tpu.pipeline_mode<synchronous>, transform_indices = @transform_4, window_bounds = array<i64: 1, 32>}, {transform_indices = @transform_5, window_bounds = array<i64: 16, 32>}]} {
    %c0_i32 = arith.constant 0 : i32
    %0 = arith.cmpi eq, %arg1, %c0_i32 : i32
    %1 = arith.extui %0 : i1 to i32
    %c0_i32_0 = arith.constant 0 : i32
    %2 = arith.cmpi ne, %1, %c0_i32_0 : i32
    scf.if %2 {
      %c0_14 = arith.constant 0 : index
      %c0_15 = arith.constant 0 : index
      %16 = vector.load %arg6[%c0_14, %c0_15] : memref<1x32xf32, #tpu.memory_space<vmem>>, vector<1x32xf32>
      %17 = vector.shape_cast %16 : vector<1x32xf32> to vector<1x32xf32>
      %18 = vector.broadcast %17 : vector<1x32xf32> to vector<16x32xf32>
      %c0_16 = arith.constant 0 : index
      %c0_17 = arith.constant 0 : index
      %19 = vector.load %arg7[%c0_16, %c0_17] : memref<16x32xf32, #tpu.memory_space<vmem>>, vector<16x32xf32>
      tpu.vector_store %arg7[%c0_16, %c0_17], %18 {strides = array<i32>} : memref<16x32xf32, #tpu.memory_space<vmem>>, vector<16x32xf32>,
    } else {
    }
    %c0 = arith.constant 0 : index
    %c0_1 = arith.constant 0 : index
    %3 = vector.load %arg7[%c0, %c0_1] : memref<16x32xf32, #tpu.memory_space<vmem>>, vector<16x32xf32>
    %c0_2 = arith.constant 0 : index
    %c0_3 = arith.constant 0 : index
    %4 = vector.load %arg2[%c0_2, %c0_3] : memref<16x32xf32, #tpu.memory_space<vmem>>, vector<16x32xf32>
    %c0_4 = arith.constant 0 : index
    %c0_5 = arith.constant 0 : index
    %5 = vector.load %arg3[%c0_4, %c0_5] : memref<32x64xf32, #tpu.memory_space<vmem>>, vector<32x64xf32>
    %cst = arith.constant dense<0.000000e+00> : vector<16x64xf32>
    %6 = tpu.matmul %4, %5, %cst {dimension_numbers = #tpu.dot_dimension_numbers<[1], [0], [0], [1], [0, 0, 1, 1], [], []>} : vector<16x32xf32>, vector<32x64xf32>, vector<16x64xf32> -> vector<16x64xf32>
    %c0_6 = arith.constant 0 : index
    %c0_7 = arith.constant 0 : index
    %7 = vector.load %arg4[%c0_6, %c0_7] : memref<1x64xf32, #tpu.memory_space<vmem>>, vector<1x64xf32>
    %8 = vector.broadcast %7 : vector<1x64xf32> to vector<16x64xf32>
    %9 = arith.addf %6, %8 : vector<16x64xf32>
    %cst_8 = arith.constant 0.000000e+00 : f32
    %10 = vector.broadcast %cst_8 : f32 to vector<16x64xf32>
    %11 = arith.maximumf %9, %10 : vector<16x64xf32>
    %c0_9 = arith.constant 0 : index
    %c0_10 = arith.constant 0 : index
    %12 = vector.load %arg5[%c0_9, %c0_10] : memref<64x32xf32, #tpu.memory_space<vmem>>, vector<64x32xf32>
    %cst_11 = arith.constant dense<0.000000e+00> : vector<16x32xf32>
    %13 = tpu.matmul %11, %12, %cst_11 {dimension_numbers = #tpu.dot_dimension_numbers<[1], [0], [0], [1], [0, 0, 1, 1], [], []>} : vector<16x64xf32>, vector<64x32xf32>, vector<16x32xf32> -> vector<16x32xf32>
    %14 = arith.addf %3, %13 : vector<16x32xf32>
    %c0_12 = arith.constant 0 : index
    %c0_13 = arith.constant 0 : index
    %15 = vector.load %arg7[%c0_12, %c0_13] : memref<16x32xf32, #tpu.memory_space<vmem>>, vector<16x32xf32>
    tpu.vector_store %arg7[%c0_12, %c0_13], %14 {strides = array<i32>} : memref<16x32xf32, #tpu.memory_space<vmem>>, vector<16x32xf32>,
    return
  }
  func.func @transform_0(%arg0: i32, %arg1: i32) -> (i32, i32) {
    %c0_i32 = arith.constant 0 : i32
    %c0_i32_0 = arith.constant 0 : i32
    return %arg0, %c0_i32 : i32, i32
  }
  func.func @transform_1(%arg0: i32, %arg1: i32) -> (i32, i32) {
    %c0_i32 = arith.constant 0 : i32
    %c0_i32_0 = arith.constant 0 : i32
    return %c0_i32, %arg1 : i32, i32
  }
  func.func @transform_2(%arg0: i32, %arg1: i32) -> (i32, i32) {
    %c0_i32 = arith.constant 0 : i32
    %c0_i32_0 = arith.constant 0 : i32
    return %c0_i32, %arg1 : i32, i32
  }
  func.func @transform_3(%arg0: i32, %arg1: i32) -> (i32, i32) {
    %c0_i32 = arith.constant 0 : i32
    %c0_i32_0 = arith.constant 0 : i32
    return %arg1, %c0_i32 : i32, i32
  }
  func.func @transform_4(%arg0: i32, %arg1: i32) -> (i32, i32) {
    %c0_i32 = arith.constant 0 : i32
    %c0_i32_0 = arith.constant 0 : i32
    %c0_i32_1 = arith.constant 0 : i32
    return %c0_i32, %c0_i32_0 : i32, i32
  }
  func.func @transform_5(%arg0: i32, %arg1: i32) -> (i32, i32) {
    %c0_i32 = arith.constant 0 : i32
    %c0_i32_0 = arith.constant 0 : i32
    return %arg0, %c0_i32 : i32, i32
  }
}

</mosaic_0001>

<llo_original>
// kernel: tpu_custom_call.1
$region0: #{tpu_custom_call.1}
  #allocation0 [shape = 'u32[]', space=smem, size = 0x4, offset = 0x4, fixed_abs, tag = 'smem constant byte address 0x4 - core index']
  #allocation1 [shape = 'u32[144,128]{1,0:T(1,128)}', space=vmem, size = 0x12000, scoped, tag = 'internal scratch']
  %s0 = inlined_call_operand.vmem [shape: f32[16,32], index: 0, kind: input, shape index: {}]
  %s1 = inlined_call_operand.vmem [shape: f32[32,64], index: 1, kind: input, shape index: {}]
  %s2 = inlined_call_operand.vmem [shape: f32[1,64], index: 2, kind: input, shape index: {}]
  %s3 = inlined_call_operand.vmem [shape: f32[64,32], index: 3, kind: input, shape index: {}]
  %s4 = inlined_call_operand.vmem [shape: f32[1,32], index: 4, kind: input, shape index: {}]
  %s5 = inlined_call_operand.hbm [shape: f32[16,32], index: 5, kind: output, shape index: {}]
  %s6 = sld [smem:[#allocation0]]
  $region34: #{tpu_custom_call.1} parent=0
    _
  %s8 = ssub.s32 1, %s6
  %s9 = scalar_select 0, %s8, %s6
  $region1: #{tpu_custom_call.1} parent=0
    #allocation2 [shape = 'u8[8192]{0}', space=vmem, size = 0x2000, scoped, tag = 'output window, operand 0, single buffered']
    #allocation3 [shape = 's32[1]{0}', space=sflag, size = 0x4, scoped, tag = 'scoped memory for tpu_custom_call.1']
    %10 = vsyncpa [#allocation3], 0
    // Predicated region
    $region2: #{tpu_custom_call.1} parent=1 // pred_check
      _
    $region3: #{tpu_custom_call.1} parent=1 // pred_check_branch
      %12 = sbr.rel (0) target = $region5
    $region4: #{tpu_custom_call.1} parent=1 // pred_region
      _
    $region5: #{tpu_custom_call.1} parent=1 // pred_fallthru
      _
    // Predicated region
    $region6: #{tpu_custom_call.1} parent=1 // pred_check
      _
    $region7: #{tpu_custom_call.1} parent=1 // pred_check_branch
      %14 = sbr.rel (0) target = $region9
    $region8: #{tpu_custom_call.1} parent=1 // pred_region
      _
    $region9: #{tpu_custom_call.1} parent=1 // pred_fallthru
      _
    // Predicated region
    $region10: #{tpu_custom_call.1} parent=1 // pred_check
      _
    $region11: #{tpu_custom_call.1} parent=1 // pred_check_branch
      %16 = sbr.rel (0) target = $region13
    $region12: #{tpu_custom_call.1} parent=1 // pred_region
      _
    $region13: #{tpu_custom_call.1} parent=1 // pred_fallthru
      _
    // Predicated region
    $region14: #{tpu_custom_call.1} parent=1 // pred_check
      _
    $region15: #{tpu_custom_call.1} parent=1 // pred_check_branch
      %18 = sbr.rel (0) target = $region17
    $region16: #{tpu_custom_call.1} parent=1 // pred_region
      _
    $region17: #{tpu_custom_call.1} parent=1 // pred_fallthru
      _
    // Predicated region
    $region18: #{tpu_custom_call.1} parent=1 // pred_check
      _
    $region19: #{tpu_custom_call.1} parent=1 // pred_check_branch
      %20 = sbr.rel (0) target = $region21
    $region20: #{tpu_custom_call.1} parent=1 // pred_region
      _
    $region21: #{tpu_custom_call.1} parent=1 // pred_fallthru
      _
    %p21 = scmp.eq.s32.totalorder 0, 0
    // Predicated region
    $region22: #{tpu_custom_call.1} parent=1 // pred_check
      %p22 = pneg %p21
    $region23: #{tpu_custom_call.1} parent=1 // pred_check_branch
      %24 = sbr.rel (%p22) target = $region25
    $region24: #{tpu_custom_call.1} parent=1 // pred_region
      %v25 = vld [vmem:[%s4] sm:$0x1]
      %v27 = vlaneseq
      %v28 = vshrl.u32 %v27, 7
      %v29 = vsub.s32 0, %v28
      %v30 = vrot.slane %v25, %v29
      %vm32 = vcmask 261120
      %33 = vst.msk [vmem:[#allocation2] sm:$0xff] %vm32, %v30
      %34 = vst.msk [vmem:[#allocation2 + $0x8] sm:$0xff] %vm32, %v30
    $region25: #{tpu_custom_call.1} parent=1 // pred_fallthru
      _
    %v35 = vld [vmem:[#allocation2] sm:$0xff]
    %v36 = vld [vmem:[#allocation2 + $0x8] sm:$0xff]
    %v37 = vld [vmem:[%s0] sm:$0xff]
    %v38 = vld [vmem:[%s0 + $0x8] sm:$0xff]
    %v39 = vld [vmem:[%s1] sm:$0xff]
    %v40 = vld [vmem:[%s1 + $0x8] sm:$0xff]
    %v41 = vld [vmem:[%s1 + $0x10] sm:$0xff]
    %v42 = vld [vmem:[%s1 + $0x18] sm:$0xff]
    %v43 = vld [vmem:[%s2] sm:$0x1]
    %v45 = vlaneseq
    %v46 = vshrl.u32 %v45, 7
    %v47 = vsub.s32 0, %v46
    %v48 = vrot.slane %v43, %v47
    %vm50 = vcmask 261120
    %v52 = vsel %vm50, %v37, 0
    %v55 = vsel %vm50, %v38, 0
    %57 = vmatprep.subr.mxu0 0.0
    %58 = vmatpush1.msra.mxu0 %v39
    %59 = vmatprep.subr.mxu0 0.0
    %60 = vmatpush1.msra.mxu0 %v40
    %61 = vmatprep.subr.mxu0 0.0
    %62 = vmatpush1.msra.mxu0 %v41
    %63 = vmatprep.subr.mxu0 0.0
    %64 = vmatpush1.msra.mxu0 %v42
    %65 = vmatprep.subr.mxu0 0.0
    %66 = vmatpush1.msra.mxu0 0.0
    %67 = vmatprep.subr.mxu0 0.0
    %68 = vmatpush1.msra.mxu0 0.0
    %69 = vmatprep.subr.mxu0 0.0
    %70 = vmatpush1.msra.mxu0 0.0
    %71 = vmatprep.subr.mxu0 0.0
    %72 = vmatpush1.msra.mxu0 0.0
    %73 = vmatprep.subr.mxu0 0.0
    %74 = vmatpush1.msra.mxu0 0.0
    %75 = vmatprep.subr.mxu0 0.0
    %76 = vmatpush1.msra.mxu0 0.0
    %77 = vmatprep.subr.mxu0 0.0
    %78 = vmatpush1.msra.mxu0 0.0
    %79 = vmatprep.subr.mxu0 0.0
    %80 = vmatpush1.msra.mxu0 0.0
    %81 = vmatprep.subr.mxu0 0.0
    %82 = vmatpush1.msra.mxu0 0.0
    %83 = vmatprep.subr.mxu0 0.0
    %84 = vmatpush1.msra.mxu0 0.0
    %85 = vmatprep.subr.mxu0 0.0
    %86 = vmatpush1.msra.mxu0 0.0
    %87 = vmatprep.subr.mxu0 0.0
    %88 = vmatpush1.msra.mxu0 0.0
    %89 = vmatprep.subr.mxu0 0.0
    %90 = vmatpush1.msra.mxu0 0.0
    %91 = vmatprep.subr.mxu0 0.0
    %92 = vmatpush1.msra.mxu0 0.0
    %93 = vmatprep.subr.mxu0 0.0
    %94 = vmatpush1.msra.mxu0 0.0
    %95 = vmatprep.subr.mxu0 0.0
    %96 = vmatpush1.msra.mxu0 0.0
    %97 = vmatprep.subr.mxu0 0.0
    %98 = vmatpush1.msra.mxu0 0.0
    %99 = vmatprep.subr.mxu0 0.0
    %100 = vmatpush1.msra.mxu0 0.0
    %101 = vmatprep.subr.mxu0 0.0
    %102 = vmatpush1.msra.mxu0 0.0
    %103 = vmatprep.subr.mxu0 0.0
    %104 = vmatpush1.msra.mxu0 0.0
    %105 = vmatprep.subr.mxu0 0.0
    %106 = vmatpush1.msra.mxu0 0.0
    %107 = vmatprep.subr.mxu0 0.0
    %108 = vmatpush1.msra.mxu0 0.0
    %109 = vmatprep.subr.mxu0 0.0
    %110 = vmatpush1.msra.mxu0 0.0
    %111 = vmatprep.subr.mxu0 0.0
    %112 = vmatpush1.msra.mxu0 0.0
    %113 = vmatprep.subr.mxu0 0.0
    %114 = vmatpush1.msra.mxu0 0.0
    %115 = vmatprep.subr.mxu0 0.0
    %116 = vmatpush1.msra.mxu0 0.0
    %117 = vmatprep.subr.mxu0 0.0
    %118 = vmatpush1.msra.mxu0 0.0
    %119 = vmatprep.subr.mxu0 0.0
    %120 = vmatpush1.msra.mxu0 0.0
    %121 = vmatprep.mubr.f32.mxu0 0.0
    %122 = vmatmul.mubr.f32.gmra.mrb[0].mxu0 %v52
    %v123 = vpop.f32.mrb[0].mxu0
    %v124 = vadd.f32 %v48, %v123
    %v125 = vpop.f32.mrb[0].mxu0
    %126 = vmatprep.mubr.f32.mxu0 0.0
    %127 = vmatmul.mubr.f32.gmra.mrb[0].mxu0 %v55
    %v128 = vpop.f32.mrb[0].mxu0
    %v129 = vadd.f32 %v48, %v128
    %v130 = vpop.f32.mrb[0].mxu0
    %131 = vdwg.mxu0
    %v132 = vmax.f32 %v124, 0.0
    %v133 = vmax.f32 %v129, 0.0
    %v134 = vld [vmem:[%s3] sm:$0xff]
    %v135 = vld [vmem:[%s3 + $0x8] sm:$0xff]
    %v136 = vld [vmem:[%s3 + $0x10] sm:$0xff]
    %v137 = vld [vmem:[%s3 + $0x18] sm:$0xff]
    %v138 = vld [vmem:[%s3 + $0x20] sm:$0xff]
    %v139 = vld [vmem:[%s3 + $0x28] sm:$0xff]
    %v140 = vld [vmem:[%s3 + $0x30] sm:$0xff]
    %v141 = vld [vmem:[%s3 + $0x38] sm:$0xff]
    %vm142 = vcmask 523264
    %v144 = vsel %vm142, %v132, 0
    %v147 = vsel %vm142, %v133, 0
    %149 = vmatprep.subr.mxu0 0.0
    %150 = vmatpush1.msra.mxu0 %v134
    %151 = vmatprep.subr.mxu0 0.0
    %152 = vmatpush1.msra.mxu0 %v135
    %153 = vmatprep.subr.mxu0 0.0
    %154 = vmatpush1.msra.mxu0 %v136
    %155 = vmatprep.subr.mxu0 0.0
    %156 = vmatpush1.msra.mxu0 %v137
    %157 = vmatprep.subr.mxu0 0.0
    %158 = vmatpush1.msra.mxu0 %v138
    %159 = vmatprep.subr.mxu0 0.0
    %160 = vmatpush1.msra.mxu0 %v139
    %161 = vmatprep.subr.mxu0 0.0
    %162 = vmatpush1.msra.mxu0 %v140
    %163 = vmatprep.subr.mxu0 0.0
    %164 = vmatpush1.msra.mxu0 %v141
    %165 = vmatprep.subr.mxu0 0.0
    %166 = vmatpush1.msra.mxu0 0.0
    %167 = vmatprep.subr.mxu0 0.0
    %168 = vmatpush1.msra.mxu0 0.0
    %169 = vmatprep.subr.mxu0 0.0
    %170 = vmatpush1.msra.mxu0 0.0
    %171 = vmatprep.subr.mxu0 0.0
    %172 = vmatpush1.msra.mxu0 0.0
    %173 = vmatprep.subr.mxu0 0.0
    %174 = vmatpush1.msra.mxu0 0.0
    %175 = vmatprep.subr.mxu0 0.0
    %176 = vmatpush1.msra.mxu0 0.0
    %177 = vmatprep.subr.mxu0 0.0
    %178 = vmatpush1.msra.mxu0 0.0
    %179 = vmatprep.subr.mxu0 0.0
    %180 = vmatpush1.msra.mxu0 0.0
    %181 = vmatprep.subr.mxu0 0.0
    %182 = vmatpush1.msra.mxu0 0.0
    %183 = vmatprep.subr.mxu0 0.0
    %184 = vmatpush1.msra.mxu0 0.0
    %185 = vmatprep.subr.mxu0 0.0
    %186 = vmatpush1.msra.mxu0 0.0
    %187 = vmatprep.subr.mxu0 0.0
    %188 = vmatpush1.msra.mxu0 0.0
    %189 = vmatprep.subr.mxu0 0.0
    %190 = vmatpush1.msra.mxu0 0.0
    %191 = vmatprep.subr.mxu0 0.0
    %192 = vmatpush1.msra.mxu0 0.0
    %193 = vmatprep.subr.mxu0 0.0
    %194 = vmatpush1.msra.mxu0 0.0
    %195 = vmatprep.subr.mxu0 0.0
    %196 = vmatpush1.msra.mxu0 0.0
    %197 = vmatprep.subr.mxu0 0.0
    %198 = vmatpush1.msra.mxu0 0.0
    %199 = vmatprep.subr.mxu0 0.0
    %200 = vmatpush1.msra.mxu0 0.0
    %201 = vmatprep.subr.mxu0 0.0
    %202 = vmatpush1.msra.mxu0 0.0
    %203 = vmatprep.subr.mxu0 0.0
    %204 = vmatpush1.msra.mxu0 0.0
    %205 = vmatprep.subr.mxu0 0.0
    %206 = vmatpush1.msra.mxu0 0.0
    %207 = vmatprep.subr.mxu0 0.0
    %208 = vmatpush1.msra.mxu0 0.0
    %209 = vmatprep.subr.mxu0 0.0
    %210 = vmatpush1.msra.mxu0 0.0
    %211 = vmatprep.subr.mxu0 0.0
    %212 = vmatpush1.msra.mxu0 0.0
    %213 = vmatprep.mubr.f32.mxu0 0.0
    %214 = vmatmul.mubr.f32.gmra.mrb[0].mxu0 %v144
    %v215 = vpop.f32.mrb[0].mxu0
    %v216 = vadd.f32 0.0, %v215
    %v217 = vpop.f32.mrb[0].mxu0
    %218 = vmatprep.mubr.f32.mxu0 0.0
    %219 = vmatmul.mubr.f32.gmra.mrb[0].mxu0 %v147
    %v220 = vpop.f32.mrb[0].mxu0
    %v221 = vadd.f32 0.0, %v220
    %v222 = vpop.f32.mrb[0].mxu0
    %223 = vdwg.mxu0
    %v224 = vadd.f32 %v35, %v216
    %v225 = vadd.f32 %v36, %v221
    %226 = vst.msk [vmem:[#allocation2] sm:$0xff] %vm50, %v224
    %227 = vst.msk [vmem:[#allocation2 + $0x8] sm:$0xff] %vm50, %v225
    // Predicated region
    $region26: #{tpu_custom_call.1} parent=1 // pred_check
      _
    $region27: #{tpu_custom_call.1} parent=1 // pred_check_branch
      %229 = sbr.rel (0) target = $region29
    $region28: #{tpu_custom_call.1} parent=1 // pred_region
      %s231 = ssub.s32 256, 256
      %232 = vsyncadd [#allocation3], %s231
      %s233 = sshll.u32 [#allocation2], 4
      %s234 = int_to_ptr.vmem [resolvable:$true] %s233
      %239 = dma.vmem_to_hbm [thread:$0]  %s234, 256, %s5, [#allocation3], 128, 128, 8
    $region29: #{tpu_custom_call.1} parent=1 // pred_fallthru
      _
    // Predicated region
    $region30: #{tpu_custom_call.1} parent=1 // pred_check
      _
    $region31: #{tpu_custom_call.1} parent=1 // pred_check_branch
      %241 = sbr.rel (0) target = $region33
    $region32: #{tpu_custom_call.1} parent=1 // pred_region
      %242 = dma.done [#allocation3], 256
    $region33: #{tpu_custom_call.1} parent=1 // pred_fallthru
      _
    %243 = vsyncpa [#allocation3], 1

</llo_original>
